<compile_context>
chip_gen: v6e
topology: v6e:2x2x1
jax: 0.10.0
libtpu: 0.0.40
codegen_flags: <defaults>
</compile_context>

<pallas_src>
import numpy as np
import jax
import jax.numpy as jnp
from jax.experimental import pallas as pl
from jax.experimental.pallas import tpu as pltpu


def _round_up(x, m):
    return ((x + m - 1) // m) * m


# ---------------------------------------------------------------------------
# Phase 1: DMA row gather.  link_emb[l] = xloc_aug[lidx[l]].
# lidx is scalar-prefetched into SMEM and drives the xloc index_map, so each
# grid step DMAs exactly one needed row (no MXU FLOPs, no resident xloc).
# ---------------------------------------------------------------------------
def gather_kernel(lidx_ref, xrow_ref, out_ref):
    del lidx_ref  # only consumed by the index_maps
    out_ref[...] = xrow_ref[...]


# ---------------------------------------------------------------------------
# Phase 2: tiled scatter-sum.  sums[u] = sum over links with uidx==u of
# link_emb[l].  Grid = (NU tiles [parallel], link tiles [arbitrary reduction]).
# Sentinel uidx == -1 (link padding) matches no user row; NU padding rows get
# zero sums and are sliced off in the wrapper.
# ---------------------------------------------------------------------------
def scatter_sum_kernel(uidx_ref, lemb_ref, out_ref, acc_ref):
    k = pl.program_id(1)

    @pl.when(k == 0)
    def _init():
        acc_ref[...] = jnp.zeros_like(acc_ref)

    tnu = acc_ref.shape[0]
    tlb = uidx_ref.shape[1]
    row0 = pl.program_id(0) * tnu
    rows = jax.lax.broadcasted_iota(jnp.int32, (tnu, tlb), 0) + row0
    # 0/1 one-hot built from the lane-dense index row (f32 to keep bit fidelity
    # with the f32 reference; see bf16 TODO at top of file).
    oh = (rows == uidx_ref[...]).astype(jnp.float32)
    acc_ref[...] += jnp.dot(oh, lemb_ref[...], preferred_element_type=jnp.float32)

    @pl.when(k == pl.num_programs(1) - 1)
    def _fin():
        out_ref[...] = acc_ref[...]


def user_embedding_forward(x_location, x_mobility_batch, x_text_batch,
                           sorted_user, sorted_location):
    # Glue (reference module semantics): concat mobility+text link records along
    # the link axis (dim=2), take day-0 records, map raw keys -> dense indices.
    x_m_t = jnp.concatenate([x_mobility_batch, x_text_batch], axis=2)
    links0 = x_m_t[:, 0]                                           # (batch, L, 2)
    batch, L, _ = links0.shape
    n_loc, D = x_location.shape
    n_user = sorted_user.shape[0]
    NU = batch * n_user

    # NOTE: jnp.take clamps out-of-range raw keys (the reference dict lookup
    # would raise); inputs are assumed in-range.
    uidx = jnp.take(sorted_user, links0[..., 0]).astype(jnp.int32)       # (batch, L)
    lidx = jnp.take(sorted_location, links0[..., 1]).astype(jnp.int32)   # (batch, L)

    # Fold batch into the link axis (block-diagonal user layout): global user
    # row = b * n_user + u.
    uidx_g = (uidx + n_user * jnp.arange(batch, dtype=jnp.int32)[:, None]
              ).reshape(batch * L)
    lidx_g = lidx.reshape(batch * L)

    # ---- link-axis padding (MXU K tile, lane multiple; 256 on v6e/v7x at scale)
    LB = batch * L
    TLB = 128 if LB <= 128 else 256
    LB_pad = _round_up(LB, TLB)
    uidx_pad = jnp.full((1, LB_pad), -1, jnp.int32).at[0, :LB].set(uidx_g)
    lidx_pad = jnp.zeros((LB_pad,), jnp.int32).at[:LB].set(lidx_g)

    # ---- D padding; fuse an all-ones count column only when it rides free.
    fuse_count = (D % 128) != 0
    D_aug = D + 1 if fuse_count else D
    D_pad = 128 * pl.cdiv(D_aug, 128)
    cols = [x_location.astype(jnp.float32)]
    if fuse_count:
        cols.append(jnp.ones((n_loc, 1), jnp.float32))
    if D_pad > D_aug:
        cols.append(jnp.zeros((n_loc, D_pad - D_aug), jnp.float32))
    xloc_aug = jnp.concatenate(cols, axis=1).reshape(n_loc, 1, D_pad)

    # ---- Phase 1: scalar-prefetch DMA row gather -----------------------------
    link_emb = pl.pallas_call(
        gather_kernel,
        out_shape=jax.ShapeDtypeStruct((LB_pad, 1, D_pad), jnp.float32),
        grid_spec=pltpu.PrefetchScalarGridSpec(
            num_scalar_prefetch=1,
            grid=(LB_pad,),
            in_specs=[pl.BlockSpec((1, 1, D_pad),
                                   lambda l, lidx_ref: (lidx_ref[l], 0, 0))],
            out_specs=pl.BlockSpec((1, 1, D_pad),
                                   lambda l, lidx_ref: (l, 0, 0)),
        ),
        compiler_params=pltpu.CompilerParams(
            dimension_semantics=("arbitrary",),
            vmem_limit_bytes=32 * 1024 * 1024),
    )(lidx_pad, xloc_aug).reshape(LB_pad, D_pad)

    # ---- Phase 2: tiled scatter-sum ------------------------------------------
    TNU = 256 if NU >= 512 else _round_up(NU, 8)
    NU_pad = _round_up(NU, TNU)

    # Working set per step: 2x(TLB,D_pad) + (TNU,D_pad) acc + output tile; a few
    # MiB at TNU=TLB=256, well under the 32 MiB scoped / 64 MiB v7x physical VMEM.
    sums = pl.pallas_call(
        scatter_sum_kernel,
        out_shape=jax.ShapeDtypeStruct((NU_pad, D_pad), jnp.float32),
        grid_spec=pltpu.PrefetchScalarGridSpec(
            num_scalar_prefetch=0,
            grid=(NU_pad // TNU, LB_pad // TLB),
            in_specs=[pl.BlockSpec((1, TLB), lambda i, k: (0, k)),
                      pl.BlockSpec((TLB, D_pad), lambda i, k: (k, 0))],
            out_specs=pl.BlockSpec((TNU, D_pad), lambda i, k: (i, 0)),
            scratch_shapes=[pltpu.VMEM((TNU, D_pad), jnp.float32)]),
        compiler_params=pltpu.CompilerParams(
            dimension_semantics=("parallel", "arbitrary"),
            vmem_limit_bytes=32 * 1024 * 1024),
    )(uidx_pad, link_emb)

    # ---- Epilogue (O(NU*D) elementwise, mem-bound): plain JAX -----------------
    sums_emb = sums[:NU, :D]
    if fuse_count:
        counts = sums[:NU, D]                                   # exact while < 2^24
    else:
        counts = jnp.zeros((NU,), jnp.float32).at[uidx_g].add(1.0)
    has_edge = counts > 0.0
    avg = sums_emb / jnp.maximum(counts, 1.0)[:, None]          # per-user mean
    avg3 = avg.reshape(batch, n_user, D)
    has3 = has_edge.reshape(batch, n_user)
    # Exact integer #users-with-edges per batch (perf-review correctness note).
    n_edge = jnp.maximum(jnp.sum(has3, axis=1), 1).astype(jnp.float32)
    mean_b = jnp.sum(avg3, axis=1) / n_edge[:, None]            # (batch, D)
    out3 = jnp.where(has3[:, :, None], avg3, mean_b[:, None, :])

    # The reference returns a Python list of per-batch user-embedding tables.
    # TODO(synk): the reference's per-batch prints of "# user with embedding" are omitted.
    return [out3[i] for i in range(batch)]


def reference_numpy(x_location, x_mobility_batch, x_text_batch, sorted_user, sorted_location):
    xl = np.asarray(x_location, dtype=np.float64)
    su = np.asarray(sorted_user)
    sl = np.asarray(sorted_location)
    xmt = np.concatenate([np.asarray(x_mobility_batch), np.asarray(x_text_batch)], axis=2)
    batch = xmt.shape[0]
    n_user, D = len(su), xl.shape[1]
    outs = []
    for i in range(batch):
        sums = np.zeros((n_user, D), np.float64)
        counts = np.zeros((n_user,), np.int64)
        for link in xmt[i, 0]:
            u, l = su[link[0]], sl[link[1]]
            sums[u] += xl[l]
            counts[u] += 1
        avg = sums / np.maximum(counts, 1)[:, None]
        has = counts > 0
        mean_emb = avg.sum(0) / max(int(has.sum()), 1)
        outs.append(np.where(has[:, None], avg, mean_emb[None, :]).astype(np.float32))
    return outs


if __name__ == "__main__":
    key = jax.random.PRNGKey(0)
    k1, k2, k3, k4, k5, k6, k7 = jax.random.split(key, 7)

    batch, n_day, L_m, L_t = 2, 3, 5, 3
    n_user, n_loc, D = 16, 24, 200

    # Deterministic synthetic parameters / inputs.
    x_location = jax.random.normal(k1, (n_loc, D), dtype=jnp.float32)

    um = jax.random.randint(k2, (batch, n_day, L_m, 1), 0, n_user, dtype=jnp.int32)
    lm = jax.random.randint(k3, (batch, n_day, L_m, 1), 0, n_loc, dtype=jnp.int32)
    x_mobility_batch = jnp.concatenate([um, lm], axis=-1)

    ut = jax.random.randint(k4, (batch, n_day, L_t, 1), 0, n_user, dtype=jnp.int32)
    lt = jax.random.randint(k5, (batch, n_day, L_t, 1), 0, n_loc, dtype=jnp.int32)
    x_text_batch = jnp.concatenate([ut, lt], axis=-1)

    sorted_user = jax.random.permutation(k6, jnp.arange(n_user, dtype=jnp.int32))
    sorted_location = jax.random.permutation(k7, jnp.arange(n_loc, dtype=jnp.int32))

    x_user = user_embedding_forward(x_location, x_mobility_batch, x_text_batch,
                                    sorted_user, sorted_location)
    x_user = [jax.block_until_ready(t) for t in x_user]

    ref = reference_numpy(x_location, x_mobility_batch, x_text_batch,
                          sorted_user, sorted_location)
    for got, want in zip(x_user, ref):
        np.testing.assert_allclose(np.asarray(got), want, rtol=1e-5, atol=1e-5)

    print("KERNEL_OK")
</pallas_src>

<mosaic_0001>
module attributes {stable_mosaic.version = 11 : i64} {
  func.func @gather_kernel(%arg0: i32, %arg1: memref<128xi32, #tpu.memory_space<smem>>, %arg2: memref<1x1x256xf32, #tpu.memory_space<vmem>>, %arg3: memref<1x1x256xf32, #tpu.memory_space<vmem>>) attributes {dimension_semantics = [#tpu.dimension_semantics<arbitrary>], iteration_bounds = array<i64: 128>, scalar_prefetch = 1 : i64, scratch_operands = 0 : i64, tpu.core_type = #tpu.core_type<tc>, window_params = [{transform_indices = @transform_0, window_bounds = array<i64: 1, 1, 256>}, {transform_indices = @transform_1, window_bounds = array<i64: 1, 1, 256>}]} {
    %c0 = arith.constant 0 : index
    %c0_0 = arith.constant 0 : index
    %c0_1 = arith.constant 0 : index
    %0 = vector.load %arg2[%c0, %c0_0, %c0_1] : memref<1x1x256xf32, #tpu.memory_space<vmem>>, vector<1x1x256xf32>
    %c0_2 = arith.constant 0 : index
    %c0_3 = arith.constant 0 : index
    %c0_4 = arith.constant 0 : index
    %1 = vector.load %arg3[%c0_2, %c0_3, %c0_4] : memref<1x1x256xf32, #tpu.memory_space<vmem>>, vector<1x1x256xf32>
    tpu.vector_store %arg3[%c0_2, %c0_3, %c0_4], %0 {strides = array<i32>} : memref<1x1x256xf32, #tpu.memory_space<vmem>>, vector<1x1x256xf32>,
    return
  }
  func.func @transform_0(%arg0: i32, %arg1: memref<128xi32, #tpu.memory_space<smem>>) -> (i32, i32, i32) {
    %0 = arith.index_cast %arg0 : i32 to index
    %1 = memref.load %arg1[%0] : memref<128xi32, #tpu.memory_space<smem>>
    %c0_i32 = arith.constant 0 : i32
    %c0_i32_0 = arith.constant 0 : i32
    %c0_i32_1 = arith.constant 0 : i32
    return %1, %c0_i32, %c0_i32_0 : i32, i32, i32
  }
  func.func @transform_1(%arg0: i32, %arg1: memref<128xi32, #tpu.memory_space<smem>>) -> (i32, i32, i32) {
    %c0_i32 = arith.constant 0 : i32
    %c0_i32_0 = arith.constant 0 : i32
    %c0_i32_1 = arith.constant 0 : i32
    return %arg0, %c0_i32, %c0_i32_0 : i32, i32, i32
  }
}

</mosaic_0001>

<llo_original>
// kernel: tpu_custom_call.1
$region0: #{tpu_custom_call.1}
  #allocation0 [shape = 'u32[]', space=smem, size = 0x4, offset = 0x4, fixed_abs, tag = 'smem constant byte address 0x4 - core index']
  #allocation1 [shape = 'u32[144,128]{1,0:T(1,128)}', space=vmem, size = 0x12000, scoped, tag = 'internal scratch']
  #allocation2 [shape = 's32[1]{0}', space=sflag, size = 0x4, scoped, tag = 'scoped memory for tpu_custom_call.1']
  #allocation3 [shape = 'u8[512]{0}', space=smem, size = 0x200, scoped, tag = 'prefetched SMEM operand 0']
  %s0 = inlined_call_operand.hbm [shape: s32[128], index: 0, kind: input, shape index: {}]
  %s1 = inlined_call_operand.hbm [shape: f32[24,1,256], index: 1, kind: input, shape index: {}]
  %s2 = inlined_call_operand.hbm [shape: f32[128,1,256], index: 2, kind: output, shape index: {}]
  %s3 = sld [smem:[#allocation0]]
  $region41: #{tpu_custom_call.1} parent=0
    _
  %s5 = ssub.s32 1, %s3
  %s6 = scalar_select 0, %s5, %s3
  %8 = dma.hbm_to_smem %s0, 16, [#allocation3], [#allocation2]
  %9 = dma.done [#allocation2], 16
  %10 = sfence
  $region1: #{tpu_custom_call.1} parent=0
    #allocation4 [shape = 'u8[2048]{0}', space=vmem, size = 0x800, scoped, tag = 'input window, operand 1']
    #allocation5 [shape = 's32[2]{0}', space=sflag, size = 0x8, scoped, tag = 'scoped memory for tpu_custom_call.1']
    #allocation6 [shape = 's32[2]{0}', space=sflag, size = 0x8, scoped, tag = 'scoped memory for tpu_custom_call.1']
    #allocation7 [shape = 'u8[2048]{0}', space=vmem, size = 0x800, scoped, tag = 'output window, operand 0']
    %11 = vsyncpa [#allocation5], 0
    %s12 = scalar_lea.sflag [#allocation5], 1
    %13 = vsyncpa %s12, 0
    %14 = vsyncpa [#allocation6], 0
    %s15 = scalar_lea.sflag [#allocation6], 1
    %16 = vsyncpa %s15, 0
    loop: start=0, step=1, limit=130
    $region2: #{tpu_custom_call.1} parent=1 // loop_pre_header
      _
    $region3: #{tpu_custom_call.1} parent=1 // loop_header
      %s18 = sphi 0, %s22
      %p19 = scmp.ge.s32.totalorder %s18, 130
      %s30 = sphi 0, %s32
      %s33 = sphi 0, %s30
      %s34 = sphi 0, %s33
      %s50 = sphi 0, %s34
      %s56 = sphi 0, %s58
      %s59 = sphi 0, %s56
      %s60 = sphi 0, %s59
      %s76 = sphi 0, %s60
    $region4: #{tpu_custom_call.1} parent=1 // loop_header_branch
      %21 = sbr.rel (%p19) target = $region8
    $region5: #{tpu_custom_call.1} parent=1 // loop_body
      %s23 = ssub.s32 %s18, 1
      %s24 = ssub.s32 %s18, 2
      %s25 = sadd.s32 %s18, 1
      %s26 = sld [smem:[#allocation3 + %s18]]
      %s27 = sld [smem:[#allocation3 + %s25]]
      %s28 = ssub.s32 %s26, %s27
      %p29 = scmp.eq.s32.totalorder %s28, 0
      %s31 = sadd.s32 %s30, 1
      %s32 = scalar_select %p29, %s30, %s31
      %p35 = pneg %p29
      %p36 = scmp.eq.s32.totalorder %s18, 127
      %p37 = por %p35, %p36
      %p38 = scmp.ne.s32.totalorder %s30, %s33
      %p39 = scmp.eq.s32.totalorder %s18, 0
      %p40 = por %p38, %p39
      %p41 = scmp.ne.s32.totalorder %s30, %s33
      %p42 = scmp.eq.s32.totalorder %s23, 127
      %p43 = por %p41, %p42
      %p44 = scmp.ne.s32.totalorder %s33, %s34
      %p45 = scmp.eq.s32.totalorder %s23, 0
      %p46 = por %p44, %p45
      %p47 = scmp.ne.s32.totalorder %s33, %s34
      %p48 = scmp.eq.s32.totalorder %s24, 127
      %p49 = por %p47, %p48
      %p51 = scmp.ne.s32.totalorder %s34, %s50
      %p52 = scmp.eq.s32.totalorder %s24, 0
      %p53 = por %p51, %p52
      %s54 = ssub.s32 %s18, %s25
      %p55 = scmp.eq.s32.totalorder %s54, 0
      %s57 = sadd.s32 %s56, 1
      %s58 = scalar_select %p55, %s56, %s57
      %p61 = pneg %p55
      %p62 = scmp.eq.s32.totalorder %s18, 127
      %p63 = por %p61, %p62
      %p64 = scmp.ne.s32.totalorder %s56, %s59
      %p65 = scmp.eq.s32.totalorder %s18, 0
      %p66 = por %p64, %p65
      %p67 = scmp.ne.s32.totalorder %s56, %s59
      %p68 = scmp.eq.s32.totalorder %s23, 127
      %p69 = por %p67, %p68
      %p70 = scmp.ne.s32.totalorder %s59, %s60
      %p71 = scmp.eq.s32.totalorder %s23, 0
      %p72 = por %p70, %p71
      %p73 = scmp.ne.s32.totalorder %s59, %s60
      %p74 = scmp.eq.s32.totalorder %s24, 127
      %p75 = por %p73, %p74
      %p77 = scmp.ne.s32.totalorder %s60, %s76
      %p78 = scmp.eq.s32.totalorder %s24, 0
      %p79 = por %p77, %p78
      %p80 = scmp.le.s32.totalorder 1, %s18
      %p81 = scmp.lt.s32.totalorder %s18, 129
      %p82 = pnand %p80, %p81
      %p83 = pneg %p82
      // Predicated region
      $region9: #{tpu_custom_call.1} parent=5 // pred_check
        _
      $region10: #{tpu_custom_call.1} parent=5 // pred_check_branch
        %85 = sbr.rel (%p82) target = $region12
      $region11: #{tpu_custom_call.1} parent=5 // pred_region
        %s86 = ssub.s32 %s18, 1
      $region12: #{tpu_custom_call.1} parent=5 // pred_fallthru
        _
      %p87 = scmp.lt.s32.totalorder %s18, 128
      // Predicated region
      $region13: #{tpu_custom_call.1} parent=5 // pred_check
        %p88 = pneg %p87
      $region14: #{tpu_custom_call.1} parent=5 // pred_check_branch
        %90 = sbr.rel (%p88) target = $region16
      $region15: #{tpu_custom_call.1} parent=5 // pred_region
        // Predicated region
        $region17: #{tpu_custom_call.1} parent=15 // pred_check
          %p91 = pneg %p40
        $region18: #{tpu_custom_call.1} parent=15 // pred_check_branch
          %93 = sbr.rel (%p91) target = $region20
        $region19: #{tpu_custom_call.1} parent=15 // pred_region
          %s94 = sand.u32 %s30, 1
          %s95 = scalar_lea.sflag [#allocation5], %s94
          %s96 = sand.u32 %s30, 1
          %s97 = smul.addr %s96, 2
          %s98 = scalar_lea.vmem [#allocation4], %s97
          %s99 = sld [smem:[#allocation3 + %s18]]
          %s101 = ssub.s32 32, 32
          %102 = vsyncadd %s95, %s101
          %s103 = smul.addr %s99, 2
          %s104 = smul.addr %s103, 16
          %s105 = scalar_lea.hbm %s1, %s104
          %s107 = sshll.u32 %s98, 4
          %s108 = int_to_ptr.vmem [resolvable:$true] %s107
          %110 = dma.hbm_to_vmem [thread:$0]  %s105, 32, %s108, %s95
        $region20: #{tpu_custom_call.1} parent=15 // pred_fallthru
          _
      $region16: #{tpu_custom_call.1} parent=5 // pred_fallthru
        _
      %p111 = scmp.le.s32.totalorder 1, %s18
      %p112 = scmp.lt.s32.totalorder %s18, 129
      %p113 = pnand %p111, %p112
      %p114 = pneg %p113
      // Predicated region
      $region21: #{tpu_custom_call.1} parent=5 // pred_check
        _
      $region22: #{tpu_custom_call.1} parent=5 // pred_check_branch
        %116 = sbr.rel (%p113) target = $region24
      $region23: #{tpu_custom_call.1} parent=5 // pred_region
        %s117 = ssub.s32 %s18, 1
        %s118 = sand.u32 %s33, 1
        %s119 = scalar_lea.sflag [#allocation5], %s118
        %s120 = sand.u32 %s33, 1
        %s121 = smul.addr %s120, 2
        %s122 = scalar_lea.vmem [#allocation4], %s121
        // Predicated region
        $region25: #{tpu_custom_call.1} parent=23 // pred_check
          %p123 = pneg %p46
        $region26: #{tpu_custom_call.1} parent=23 // pred_check_branch
          %125 = sbr.rel (%p123) target = $region28
        $region27: #{tpu_custom_call.1} parent=23 // pred_region
          %126 = dma.done %s119, 32
        $region28: #{tpu_custom_call.1} parent=23 // pred_fallthru
          _
        %s127 = sand.u32 %s33, 1
        %s128 = scalar_lea.sflag [#allocation5], %s127
        %s129 = sand.u32 %s33, 1
        %s130 = smul.addr %s129, 2
        %s131 = scalar_lea.vmem [#allocation4], %s130
        %p132 = pneg %p46
        %p133 = pneg %p43
        %p134 = pneg %p72
        %p135 = pneg %p69
        %s136 = sand.u32 %s59, 1
        %s137 = scalar_lea.sflag [#allocation6], %s136
        %s138 = sand.u32 %s59, 1
        %s139 = smul.addr %s138, 2
        %s140 = scalar_lea.vmem [#allocation7], %s139
        %s141 = sld [smem:[#allocation3 + %s23]]
        %v142 = vld [vmem:[%s122] sm:$0x3]
        %v143 = vlaneseq
        %vm144 = vcmp.ge.s32.totalorder %v143, 0
        %vm145 = vcmp.lt.s32.totalorder %v143, 256
        %vm146 = vmand %vm144, %vm145
        %147 = vst.msk [vmem:[%s140] sm:$0x3] %vm146, %v142
        %s148 = sand.u32 %s59, 1
        %s149 = scalar_lea.sflag [#allocation6], %s148
        %s150 = sand.u32 %s59, 1
        %s151 = smul.addr %s150, 2
        %s152 = scalar_lea.vmem [#allocation7], %s151
        // Predicated region
        $region29: #{tpu_custom_call.1} parent=23 // pred_check
          %p153 = pneg %p69
        $region30: #{tpu_custom_call.1} parent=23 // pred_check_branch
          %155 = sbr.rel (%p153) target = $region32
        $region31: #{tpu_custom_call.1} parent=23 // pred_region
          %s157 = ssub.s32 32, 32
          %158 = vsyncadd %s149, %s157
          %s159 = smul.addr %s23, 2
          %s160 = smul.addr %s159, 16
          %s161 = scalar_lea.hbm %s2, %s160
          %s163 = sshll.u32 %s152, 4
          %s164 = int_to_ptr.vmem [resolvable:$true] %s163
          %166 = dma.vmem_to_hbm [thread:$0]  %s164, 32, %s161, %s149
        $region32: #{tpu_custom_call.1} parent=23 // pred_fallthru
          _
      $region24: #{tpu_custom_call.1} parent=5 // pred_fallthru
        _
      %p167 = scmp.le.s32.totalorder 2, %s18
      // Predicated region
      $region33: #{tpu_custom_call.1} parent=5 // pred_check
        %p168 = pneg %p167
      $region34: #{tpu_custom_call.1} parent=5 // pred_check_branch
        %170 = sbr.rel (%p168) target = $region36
      $region35: #{tpu_custom_call.1} parent=5 // pred_region
        %s171 = ssub.s32 %s18, 2
        // Predicated region
        $region37: #{tpu_custom_call.1} parent=35 // pred_check
          %p172 = pneg %p75
        $region38: #{tpu_custom_call.1} parent=35 // pred_check_branch
          %174 = sbr.rel (%p172) target = $region40
        $region39: #{tpu_custom_call.1} parent=35 // pred_region
          %s175 = sand.u32 %s60, 1
          %s176 = scalar_lea.sflag [#allocation6], %s175
          %s177 = sand.u32 %s60, 1
          %s178 = smul.addr %s177, 2
          %s179 = scalar_lea.vmem [#allocation7], %s178
          %180 = dma.done %s176, 32
        $region40: #{tpu_custom_call.1} parent=35 // pred_fallthru
          _
      $region36: #{tpu_custom_call.1} parent=5 // pred_fallthru
        _
    $region6: #{tpu_custom_call.1} parent=1 // loop_footer
      %s22 = sadd.s32 1, %s18
    $region7: #{tpu_custom_call.1} parent=1 // loop_footer_branch
      %17 = sbr.rel target = $region3
    $region8: #{tpu_custom_call.1} parent=1 // loop_exit
      _
    %181 = vsyncpa [#allocation5], 1
    %s182 = scalar_lea.sflag [#allocation5], 1
    %183 = vsyncpa %s182, 1
    %184 = vsyncpa [#allocation6], 1
    %s185 = scalar_lea.sflag [#allocation6], 1
    %186 = vsyncpa %s185, 1

</llo_original>
